<compile_context>
chip_gen: v7x
topology: tpu7x:2x2x1
jax: 0.10.0
libtpu: 0.0.40
codegen_flags: <defaults>
</compile_context>

<pallas_src>
import jax
import jax.numpy as jnp
from jax.experimental import pallas as pl
from jax.experimental.pallas import tpu as pltpu

IN_DIM = 28 * 28      # 784
HID_DIM = 128
OUT_DIM = 10
OUT_PAD = 128         # lane-dense padded logits width


def mlp_kernel(x_ref, w1_ref, b1_ref, w2_ref, b2_ref, o_ref):
    # fc1: (TILE_B, 784) bf16 @ (784, 128) bf16 -> f32 accumulator
    h = jnp.dot(x_ref[...], w1_ref[...], preferred_element_type=jnp.float32)
    h = jnp.maximum(h + b1_ref[...], 0.0)                    # bias + ReLU in f32
    # fc2: (TILE_B, 128) bf16 @ (128, 128-padded) bf16 -> f32 (cols 10..127 stay 0)
    y = jnp.dot(h.astype(jnp.bfloat16), w2_ref[...],
                preferred_element_type=jnp.float32)
    o_ref[...] = (y + b2_ref[...]).astype(o_ref.dtype)       # store bf16


def _round_up(n, m):
    return ((n + m - 1) // m) * m


def simple_nn_forward(x, w1, b1, w2, b2, *, tile_b=2048, out_dtype=jnp.bfloat16):
    """x: [B, 1, 28, 28] or [B, 784].
    w1: [128, 784], b1: [128], w2: [10, 128], b2: [10] (PyTorch Linear convention).
    Returns logits [B, 10] (bf16 by default)."""
    x2d = x.reshape(-1, IN_DIM)                              # x.view(-1, 784)
    B = x2d.shape[0]
    x2d = x2d.astype(jnp.bfloat16)                           # fuses with producer under jit

    # Tile size: large to amortize the ~0.35us/step pipeline overhead, multiple
    # of 16 (bf16 sublane packing), and capped so the batch grid has >= 2 steps
    # whenever B allows it (keeps both v7x TensorCores busy).  No batch padding:
    # the ragged last block is handled by Pallas masked boundary reads/writes.
    TILE_B = max(16, min(tile_b, _round_up(pl.cdiv(B, 2), 16)))
    grid = (pl.cdiv(B, TILE_B),)

    # PyTorch [out, in] -> [in, out]; matmul operands bf16, biases f32.
    w1_t = w1.T.astype(jnp.bfloat16)                                   # (784, 128)
    b1_2d = b1.reshape(1, HID_DIM).astype(jnp.float32)                 # (1, 128)
    w2_p = jnp.pad(w2.T.astype(jnp.bfloat16),
                   ((0, 0), (0, OUT_PAD - OUT_DIM)))                   # (128, 128)
    b2_p = jnp.pad(b2.reshape(1, OUT_DIM).astype(jnp.float32),
                   ((0, 0), (0, OUT_PAD - OUT_DIM)))                   # (1, 128)

    grid_spec = pl.GridSpec(
        grid=grid,
        in_specs=[
            pl.BlockSpec((TILE_B, IN_DIM), lambda i: (i, 0)),   # streamed x tile
            pl.BlockSpec(w1_t.shape, lambda i: (0, 0)),         # VMEM-resident weights
            pl.BlockSpec(b1_2d.shape, lambda i: (0, 0)),
            pl.BlockSpec(w2_p.shape, lambda i: (0, 0)),
            pl.BlockSpec(b2_p.shape, lambda i: (0, 0)),
        ],
        out_specs=pl.BlockSpec((TILE_B, OUT_PAD), lambda i: (i, 0)),
    )

    weight_bytes = w1_t.size * 2 + b1_2d.size * 4 + w2_p.size * 2 + b2_p.size * 4
    cost = pl.CostEstimate(
        flops=2 * B * (IN_DIM * HID_DIM + HID_DIM * OUT_PAD),
        transcendentals=0,
        bytes_accessed=B * IN_DIM * 2 + weight_bytes + B * OUT_PAD * 2,
    )

    out = pl.pallas_call(
        mlp_kernel,
        out_shape=jax.ShapeDtypeStruct((B, OUT_PAD), out_dtype),
        grid_spec=grid_spec,
        compiler_params=pltpu.CompilerParams(
            dimension_semantics=("parallel",),      # shard batch tiles across TCs (v7x)
            vmem_limit_bytes=32 * 1024 * 1024,      # ~8 MB actually used at TILE_B=2048
        ),
        cost_estimate=cost,
    )(x2d, w1_t, b1_2d, w2_p, b2_p)

    # Tiny slice, fuses under jit; logits stay bf16 for the consumer.
    return out[:, :OUT_DIM]


def init_params(key):
    """Deterministic init matching nn.Linear shapes (Kaiming-uniform-ish)."""
    k1, k2, k3, k4 = jax.random.split(key, 4)
    lim1 = 1.0 / IN_DIM ** 0.5
    lim2 = 1.0 / HID_DIM ** 0.5
    w1 = jax.random.uniform(k1, (HID_DIM, IN_DIM), jnp.float32, -lim1, lim1)
    b1 = jax.random.uniform(k2, (HID_DIM,), jnp.float32, -lim1, lim1)
    w2 = jax.random.uniform(k3, (OUT_DIM, HID_DIM), jnp.float32, -lim2, lim2)
    b2 = jax.random.uniform(k4, (OUT_DIM,), jnp.float32, -lim2, lim2)
    return w1, b1, w2, b2


if __name__ == "__main__":
    key = jax.random.PRNGKey(0)
    kx, kp = jax.random.split(key)

    # Small MNIST-shaped batch (NCHW).  B=24 with TILE_B=16 gives a 2-step grid
    # with a ragged last block, exercising the multi-tile pipeline and the
    # masked boundary path (no batch padding anywhere).
    B = 24
    x = jax.random.normal(kx, (B, 1, 28, 28), jnp.float32)
    w1, b1, w2, b2 = init_params(kp)

    fwd = jax.jit(simple_nn_forward)
    out = jax.block_until_ready(fwd(x, w1, b1, w2, b2))

    # Pure-JAX f32 reference; kernel runs bf16 matmuls -> loose tolerance.
    x2d = x.reshape(-1, IN_DIM)
    ref = jnp.maximum(x2d @ w1.T + b1, 0.0) @ w2.T + b2

    assert out.shape == (B, OUT_DIM)
    assert jnp.allclose(out.astype(jnp.float32), ref, atol=5e-2, rtol=5e-2)

    print("KERNEL_OK")
</pallas_src>

<mosaic_0001>
module attributes {stable_mosaic.version = 11 : i64} {
  func.func @mlp_kernel(%arg0: i32, %arg1: memref<16x784xbf16, #tpu.memory_space<vmem>>, %arg2: memref<784x128xbf16, #tpu.memory_space<vmem>>, %arg3: memref<1x128xf32, #tpu.memory_space<vmem>>, %arg4: memref<128x128xbf16, #tpu.memory_space<vmem>>, %arg5: memref<1x128xf32, #tpu.memory_space<vmem>>, %arg6: memref<16x128xbf16, #tpu.memory_space<vmem>>) attributes {dimension_semantics = [#tpu.dimension_semantics<parallel>], iteration_bounds = array<i64: 2>, scalar_prefetch = 0 : i64, scratch_operands = 0 : i64, tpu.core_type = #tpu.core_type<tc>, window_params = [{transform_indices = @transform_0, window_bounds = array<i64: 16, 784>}, {pipeline_mode = #tpu.pipeline_mode<synchronous>, transform_indices = @transform_1, window_bounds = array<i64: 784, 128>}, {pipeline_mode = #tpu.pipeline_mode<synchronous>, transform_indices = @transform_2, window_bounds = array<i64: 1, 128>}, {pipeline_mode = #tpu.pipeline_mode<synchronous>, transform_indices = @transform_3, window_bounds = array<i64: 128, 128>}, {pipeline_mode = #tpu.pipeline_mode<synchronous>, transform_indices = @transform_4, window_bounds = array<i64: 1, 128>}, {transform_indices = @transform_5, window_bounds = array<i64: 16, 128>}]} {
    %c0 = arith.constant 0 : index
    %c0_0 = arith.constant 0 : index
    %0 = vector.load %arg1[%c0, %c0_0] : memref<16x784xbf16, #tpu.memory_space<vmem>>, vector<16x784xbf16>
    %c0_1 = arith.constant 0 : index
    %c0_2 = arith.constant 0 : index
    %1 = vector.load %arg2[%c0_1, %c0_2] : memref<784x128xbf16, #tpu.memory_space<vmem>>, vector<784x128xbf16>
    %cst = arith.constant dense<0.000000e+00> : vector<16x128xf32>
    %2 = tpu.matmul %0, %1, %cst {dimension_numbers = #tpu.dot_dimension_numbers<[1], [0], [0], [1], [0, 0, 1, 1], [], []>} : vector<16x784xbf16>, vector<784x128xbf16>, vector<16x128xf32> -> vector<16x128xf32>
    %c0_3 = arith.constant 0 : index
    %c0_4 = arith.constant 0 : index
    %3 = vector.load %arg3[%c0_3, %c0_4] : memref<1x128xf32, #tpu.memory_space<vmem>>, vector<1x128xf32>
    %4 = vector.broadcast %3 : vector<1x128xf32> to vector<16x128xf32>
    %5 = arith.addf %2, %4 : vector<16x128xf32>
    %cst_5 = arith.constant 0.000000e+00 : f32
    %6 = vector.broadcast %cst_5 : f32 to vector<16x128xf32>
    %7 = arith.maximumf %5, %6 : vector<16x128xf32>
    %8 = arith.truncf %7 : vector<16x128xf32> to vector<16x128xbf16>
    %c0_6 = arith.constant 0 : index
    %c0_7 = arith.constant 0 : index
    %9 = vector.load %arg4[%c0_6, %c0_7] : memref<128x128xbf16, #tpu.memory_space<vmem>>, vector<128x128xbf16>
    %cst_8 = arith.constant dense<0.000000e+00> : vector<16x128xf32>
    %10 = tpu.matmul %8, %9, %cst_8 {dimension_numbers = #tpu.dot_dimension_numbers<[1], [0], [0], [1], [0, 0, 1, 1], [], []>} : vector<16x128xbf16>, vector<128x128xbf16>, vector<16x128xf32> -> vector<16x128xf32>
    %c0_9 = arith.constant 0 : index
    %c0_10 = arith.constant 0 : index
    %11 = vector.load %arg5[%c0_9, %c0_10] : memref<1x128xf32, #tpu.memory_space<vmem>>, vector<1x128xf32>
    %12 = vector.broadcast %11 : vector<1x128xf32> to vector<16x128xf32>
    %13 = arith.addf %10, %12 : vector<16x128xf32>
    %14 = arith.truncf %13 : vector<16x128xf32> to vector<16x128xbf16>
    %c0_11 = arith.constant 0 : index
    %c0_12 = arith.constant 0 : index
    %15 = vector.load %arg6[%c0_11, %c0_12] : memref<16x128xbf16, #tpu.memory_space<vmem>>, vector<16x128xbf16>
    tpu.vector_store %arg6[%c0_11, %c0_12], %14 {strides = array<i32>} : memref<16x128xbf16, #tpu.memory_space<vmem>>, vector<16x128xbf16>,
    return
  }
  func.func @transform_0(%arg0: i32) -> (i32, i32) {
    %c0_i32 = arith.constant 0 : i32
    %c0_i32_0 = arith.constant 0 : i32
    return %arg0, %c0_i32 : i32, i32
  }
  func.func @transform_1(%arg0: i32) -> (i32, i32) {
    %c0_i32 = arith.constant 0 : i32
    %c0_i32_0 = arith.constant 0 : i32
    %c0_i32_1 = arith.constant 0 : i32
    return %c0_i32, %c0_i32_0 : i32, i32
  }
  func.func @transform_2(%arg0: i32) -> (i32, i32) {
    %c0_i32 = arith.constant 0 : i32
    %c0_i32_0 = arith.constant 0 : i32
    %c0_i32_1 = arith.constant 0 : i32
    return %c0_i32, %c0_i32_0 : i32, i32
  }
  func.func @transform_3(%arg0: i32) -> (i32, i32) {
    %c0_i32 = arith.constant 0 : i32
    %c0_i32_0 = arith.constant 0 : i32
    %c0_i32_1 = arith.constant 0 : i32
    return %c0_i32, %c0_i32_0 : i32, i32
  }
  func.func @transform_4(%arg0: i32) -> (i32, i32) {
    %c0_i32 = arith.constant 0 : i32
    %c0_i32_0 = arith.constant 0 : i32
    %c0_i32_1 = arith.constant 0 : i32
    return %c0_i32, %c0_i32_0 : i32, i32
  }
  func.func @transform_5(%arg0: i32) -> (i32, i32) {
    %c0_i32 = arith.constant 0 : i32
    %c0_i32_0 = arith.constant 0 : i32
    return %arg0, %c0_i32 : i32, i32
  }
}

</mosaic_0001>

<llo_original>
// kernel: simple_nn_forward.1
$region0: #{simple_nn_forward.1}
  #allocation0 [shape = 'u32[]', space=smem, size = 0x4, offset = 0x4, fixed_abs, tag = 'smem constant byte address 0x4 - core index']
  #allocation1 [shape = 'u32[144,128]{1,0:T(1,128)}', space=vmem, size = 0x12000, scoped, tag = 'internal scratch']
  %s0 = inlined_call_operand.vmem [shape: bf16[24,784], index: 0, kind: input, shape index: {}]
  %s1 = inlined_call_operand.vmem [shape: bf16[784,128], index: 1, kind: input, shape index: {}]
  %s2 = inlined_call_operand.vmem [shape: f32[1,128], index: 2, kind: input, shape index: {}]
  %s3 = inlined_call_operand.vmem [shape: bf16[128,128], index: 3, kind: input, shape index: {}]
  %s4 = inlined_call_operand.vmem [shape: f32[1,128], index: 4, kind: input, shape index: {}]
  %s5 = inlined_call_operand.vmem [shape: bf16[24,128], index: 5, kind: output, shape index: {}]
  %s6 = sld [smem:[#allocation0]]
  $region97: #{simple_nn_forward.1} parent=0
    _
  %s8 = ssub.s32 1, %s6
  %s9 = scalar_select 0, %s8, %s6
  $region1: #{simple_nn_forward.1} parent=0
    #allocation2 [shape = 'u8[8192]{0}', space=vmem, size = 0x2000, scoped, tag = 'output window, operand 0']
    loop: start=0, step=1, limit=4
    $region2: #{simple_nn_forward.1} parent=1 // loop_pre_header
      _
    $region3: #{simple_nn_forward.1} parent=1 // loop_header
      %s11 = sphi 0, %s15
      %p12 = scmp.ge.s32.totalorder %s11, 4
      %s21 = sphi 0, %s23
      %s24 = sphi 0, %s21
      %s25 = sphi 0, %s24
      %s41 = sphi 0, %s25
      %s45 = sphi 0, %s45
      %s47 = sphi 0, %s45
      %s48 = sphi 0, %s47
      %s62 = sphi 0, %s48
      %s66 = sphi 0, %s66
      %s68 = sphi 0, %s66
      %s69 = sphi 0, %s68
      %s83 = sphi 0, %s69
      %s87 = sphi 0, %s87
      %s89 = sphi 0, %s87
      %s90 = sphi 0, %s89
      %s104 = sphi 0, %s90
      %s108 = sphi 0, %s108
      %s110 = sphi 0, %s108
      %s111 = sphi 0, %s110
      %s125 = sphi 0, %s111
      %s131 = sphi 0, %s133
      %s134 = sphi 0, %s131
      %s135 = sphi 0, %s134
      %s151 = sphi 0, %s135
    $region4: #{simple_nn_forward.1} parent=1 // loop_header_branch
      %14 = sbr.rel (%p12) target = $region8
    $region5: #{simple_nn_forward.1} parent=1 // loop_body
      %s16 = ssub.s32 %s11, 1
      %s17 = ssub.s32 %s11, 2
      %s18 = sadd.s32 %s11, 1
      %s19 = ssub.s32 %s11, %s18
      %p20 = scmp.eq.s32.totalorder %s19, 0
      %s22 = sadd.s32 %s21, 1
      %s23 = scalar_select %p20, %s21, %s22
      %p26 = pneg %p20
      %p27 = scmp.eq.s32.totalorder %s11, 1
      %p28 = por %p26, %p27
      %p29 = scmp.ne.s32.totalorder %s21, %s24
      %p30 = scmp.eq.s32.totalorder %s11, 0
      %p31 = por %p29, %p30
      %p32 = scmp.ne.s32.totalorder %s21, %s24
      %p33 = scmp.eq.s32.totalorder %s16, 1
      %p34 = por %p32, %p33
      %p35 = scmp.ne.s32.totalorder %s24, %s25
      %p36 = scmp.eq.s32.totalorder %s16, 0
      %p37 = por %p35, %p36
      %p38 = scmp.ne.s32.totalorder %s24, %s25
      %p39 = scmp.eq.s32.totalorder %s17, 1
      %p40 = por %p38, %p39
      %p42 = scmp.ne.s32.totalorder %s25, %s41
      %p43 = scmp.eq.s32.totalorder %s17, 0
      %p44 = por %p42, %p43
      %s46 = sadd.s32 %s45, 1
      %p49 = scmp.eq.s32.totalorder %s11, 1
      %p50 = scmp.ne.s32.totalorder %s45, %s47
      %p51 = scmp.eq.s32.totalorder %s11, 0
      %p52 = por %p50, %p51
      %p53 = scmp.ne.s32.totalorder %s45, %s47
      %p54 = scmp.eq.s32.totalorder %s16, 1
      %p55 = por %p53, %p54
      %p56 = scmp.ne.s32.totalorder %s47, %s48
      %p57 = scmp.eq.s32.totalorder %s16, 0
      %p58 = por %p56, %p57
      %p59 = scmp.ne.s32.totalorder %s47, %s48
      %p60 = scmp.eq.s32.totalorder %s17, 1
      %p61 = por %p59, %p60
      %p63 = scmp.ne.s32.totalorder %s48, %s62
      %p64 = scmp.eq.s32.totalorder %s17, 0
      %p65 = por %p63, %p64
      %s67 = sadd.s32 %s66, 1
      %p70 = scmp.eq.s32.totalorder %s11, 1
      %p71 = scmp.ne.s32.totalorder %s66, %s68
      %p72 = scmp.eq.s32.totalorder %s11, 0
      %p73 = por %p71, %p72
      %p74 = scmp.ne.s32.totalorder %s66, %s68
      %p75 = scmp.eq.s32.totalorder %s16, 1
      %p76 = por %p74, %p75
      %p77 = scmp.ne.s32.totalorder %s68, %s69
      %p78 = scmp.eq.s32.totalorder %s16, 0
      %p79 = por %p77, %p78
      %p80 = scmp.ne.s32.totalorder %s68, %s69
      %p81 = scmp.eq.s32.totalorder %s17, 1
      %p82 = por %p80, %p81
      %p84 = scmp.ne.s32.totalorder %s69, %s83
      %p85 = scmp.eq.s32.totalorder %s17, 0
      %p86 = por %p84, %p85
      %s88 = sadd.s32 %s87, 1
      %p91 = scmp.eq.s32.totalorder %s11, 1
      %p92 = scmp.ne.s32.totalorder %s87, %s89
      %p93 = scmp.eq.s32.totalorder %s11, 0
      %p94 = por %p92, %p93
      %p95 = scmp.ne.s32.totalorder %s87, %s89
      %p96 = scmp.eq.s32.totalorder %s16, 1
      %p97 = por %p95, %p96
      %p98 = scmp.ne.s32.totalorder %s89, %s90
      %p99 = scmp.eq.s32.totalorder %s16, 0
      %p100 = por %p98, %p99
      %p101 = scmp.ne.s32.totalorder %s89, %s90
      %p102 = scmp.eq.s32.totalorder %s17, 1
      %p103 = por %p101, %p102
      %p105 = scmp.ne.s32.totalorder %s90, %s104
      %p106 = scmp.eq.s32.totalorder %s17, 0
      %p107 = por %p105, %p106
      %s109 = sadd.s32 %s108, 1
      %p112 = scmp.eq.s32.totalorder %s11, 1
      %p113 = scmp.ne.s32.totalorder %s108, %s110
      %p114 = scmp.eq.s32.totalorder %s11, 0
      %p115 = por %p113, %p114
      %p116 = scmp.ne.s32.totalorder %s108, %s110
      %p117 = scmp.eq.s32.totalorder %s16, 1
      %p118 = por %p116, %p117
      %p119 = scmp.ne.s32.totalorder %s110, %s111
      %p120 = scmp.eq.s32.totalorder %s16, 0
      %p121 = por %p119, %p120
      %p122 = scmp.ne.s32.totalorder %s110, %s111
      %p123 = scmp.eq.s32.totalorder %s17, 1
      %p124 = por %p122, %p123
      %p126 = scmp.ne.s32.totalorder %s111, %s125
      %p127 = scmp.eq.s32.totalorder %s17, 0
      %p128 = por %p126, %p127
      %s129 = ssub.s32 %s11, %s18
      %p130 = scmp.eq.s32.totalorder %s129, 0
      %s132 = sadd.s32 %s131, 1
      %s133 = scalar_select %p130, %s131, %s132
      %p136 = pneg %p130
      %p137 = scmp.eq.s32.totalorder %s11, 1
      %p138 = por %p136, %p137
      %p139 = scmp.ne.s32.totalorder %s131, %s134
      %p140 = scmp.eq.s32.totalorder %s11, 0
      %p141 = por %p139, %p140
      %p142 = scmp.ne.s32.totalorder %s131, %s134
      %p143 = scmp.eq.s32.totalorder %s16, 1
      %p144 = por %p142, %p143
      %p145 = scmp.ne.s32.totalorder %s134, %s135
      %p146 = scmp.eq.s32.totalorder %s16, 0
      %p147 = por %p145, %p146
      %p148 = scmp.ne.s32.totalorder %s134, %s135
      %p149 = scmp.eq.s32.totalorder %s17, 1
      %p150 = por %p148, %p149
      %p152 = scmp.ne.s32.totalorder %s135, %s151
      %p153 = scmp.eq.s32.totalorder %s17, 0
      %p154 = por %p152, %p153
      %p155 = scmp.le.s32.totalorder 1, %s11
      %p156 = scmp.lt.s32.totalorder %s11, 3
      %p157 = pnand %p155, %p156
      %p158 = pneg %p157
      // Predicated region
      $region9: #{simple_nn_forward.1} parent=5 // pred_check
        _
      $region10: #{simple_nn_forward.1} parent=5 // pred_check_branch
        %160 = sbr.rel (%p157) target = $region12
      $region11: #{simple_nn_forward.1} parent=5 // pred_region
        %s161 = ssub.s32 %s11, 1
        // Predicated region
        $region13: #{simple_nn_forward.1} parent=11 // pred_check
          %p162 = pneg %p58
        $region14: #{simple_nn_forward.1} parent=11 // pred_check_branch
          %164 = sbr.rel (%p162) target = $region16
        $region15: #{simple_nn_forward.1} parent=11 // pred_region
          _
        $region16: #{simple_nn_forward.1} parent=11 // pred_fallthru
          _
        // Predicated region
        $region17: #{simple_nn_forward.1} parent=11 // pred_check
          %p165 = pneg %p79
        $region18: #{simple_nn_forward.1} parent=11 // pred_check_branch
          %167 = sbr.rel (%p165) target = $region20
        $region19: #{simple_nn_forward.1} parent=11 // pred_region
          _
        $region20: #{simple_nn_forward.1} parent=11 // pred_fallthru
          _
        // Predicated region
        $region21: #{simple_nn_forward.1} parent=11 // pred_check
          %p168 = pneg %p100
        $region22: #{simple_nn_forward.1} parent=11 // pred_check_branch
          %170 = sbr.rel (%p168) target = $region24
        $region23: #{simple_nn_forward.1} parent=11 // pred_region
          _
        $region24: #{simple_nn_forward.1} parent=11 // pred_fallthru
          _
        // Predicated region
        $region25: #{simple_nn_forward.1} parent=11 // pred_check
          %p171 = pneg %p121
        $region26: #{simple_nn_forward.1} parent=11 // pred_check_branch
          %173 = sbr.rel (%p171) target = $region28
        $region27: #{simple_nn_forward.1} parent=11 // pred_region
          _
        $region28: #{simple_nn_forward.1} parent=11 // pred_fallthru
          _
      $region12: #{simple_nn_forward.1} parent=5 // pred_fallthru
        _
      %p174 = scmp.lt.s32.totalorder %s11, 2
      // Predicated region
      $region29: #{simple_nn_forward.1} parent=5 // pred_check
        %p175 = pneg %p174
      $region30: #{simple_nn_forward.1} parent=5 // pred_check_branch
        %177 = sbr.rel (%p175) target = $region32
      $region31: #{simple_nn_forward.1} parent=5 // pred_region
        // Predicated region
        $region33: #{simple_nn_forward.1} parent=31 // pred_check
          %p178 = pneg %p31
        $region34: #{simple_nn_forward.1} parent=31 // pred_check_branch
          %180 = sbr.rel (%p178) target = $region36
        $region35: #{simple_nn_forward.1} parent=31 // pred_region
          %s181 = smul.u32 2, %s11
          %s182 = ssub.s32 3, %s181
          %p183 = scmp.lt.s32.totalorder %s182, 2
          %s184 = scalar_select %p183, %s182, 2
          %s185 = smul.u32 64, %s184
          %s186 = smul.u32 %s185, 7
          %p187 = scmp.lt.s32.totalorder %s181, 2
          %s188 = scalar_select %p187, %s181, 2
          %s189 = smul.addr %s188, 7
          %s190 = smul.addr %s189, 4
          %s191 = scalar_lea.vmem %s0, %s190
          %s192 = smul.u32 2, %s11
          %s193 = ssub.s32 3, %s192
          %p194 = scmp.lt.s32.totalorder %s193, 2
          %s195 = scalar_select %p194, %s193, 2
          %s196 = smul.u32 64, %s195
          %s197 = smul.u32 %s196, 7
        $region36: #{simple_nn_forward.1} parent=31 // pred_fallthru
          _
      $region32: #{simple_nn_forward.1} parent=5 // pred_fallthru
        _
      %p198 = scmp.le.s32.totalorder 1, %s11
      %p199 = scmp.lt.s32.totalorder %s11, 3
      %p200 = pnand %p198, %p199
      %p201 = pneg %p200
      // Predicated region
      $region37: #{simple_nn_forward.1} parent=5 // pred_check
        _
      $region38: #{simple_nn_forward.1} parent=5 // pred_check_branch
        %203 = sbr.rel (%p200) target = $region40
      $region39: #{simple_nn_forward.1} parent=5 // pred_region
        %s204 = ssub.s32 %s11, 1
        %s205 = smul.u32 2, %s16
        %s206 = ssub.s32 3, %s205
        %p207 = scmp.lt.s32.totalorder %s206, 2
        %s208 = scalar_select %p207, %s206, 2
        %s209 = smul.u32 64, %s208
        %s210 = smul.u32 %s209, 7
        %p211 = scmp.lt.s32.totalorder %s205, 2
        %s212 = scalar_select %p211, %s205, 2
        %s213 = smul.addr %s212, 7
        %s214 = smul.addr %s213, 4
        %s215 = scalar_lea.vmem %s0, %s214
        %p216 = pneg %p37
        %p217 = pneg %p34
        %p218 = pneg %p58
        %p219 = pneg %p55
        %p220 = pneg %p79
        %p221 = pneg %p76
        %p222 = pneg %p100
        %p223 = pneg %p97
        %p224 = pneg %p121
        %p225 = pneg %p118
        %p226 = pneg %p147
        %p227 = pneg %p144
        %s228 = sand.u32 %s134, 1
        %s229 = sand.u32 %s134, 1
        %s230 = smul.addr %s229, 8
        %s231 = scalar_lea.vmem [#allocation2], %s230
        %s232 = smul.u32 2, %s16
        %s233 = ssub.s32 3, %s232
        %p234 = scmp.lt.s32.totalorder %s233, 2
        %s235 = scalar_select %p234, %s233, 2
        %s236 = smul.u32 64, %s235
        %s237 = smul.u32 %s236, 7
        %p238 = scmp.lt.s32.totalorder %s232, 2
        %s239 = scalar_select %p238, %s232, 2
        %s240 = smul.addr %s239, 7
        %s241 = smul.addr %s240, 4
        %s242 = scalar_lea.vmem %s0, %s241
        %s243 = smul.u32 2, %s16
        %s244 = ssub.s32 3, %s243
        %p245 = scmp.lt.s32.totalorder %s244, 2
        %s246 = scalar_select %p245, %s244, 2
        %s247 = smul.u32 64, %s246
        %s248 = smul.u32 %s247, 7
        %s249 = smul.u32 2, %s16
        %s250 = ssub.s32 3, %s249
        %p251 = scmp.lt.s32.totalorder %s250, 2
        %s252 = scalar_select %p251, %s250, 2
        %s253 = smul.u32 64, %s252
        %v255 = vld [vmem:[%s242] sm:$0xff]
        %v256 = vld [vmem:[%s242 + $0x8] sm:$0xff]
        %v257 = vld [vmem:[%s242 + $0x10] sm:$0xff]
        %v258 = vld [vmem:[%s242 + $0x18] sm:$0xf]
        %v259 = vld [vmem:[%s242 + $0x1c] sm:$0xff]
        %v260 = vld [vmem:[%s242 + $0x24] sm:$0xff]
        %v261 = vld [vmem:[%s242 + $0x2c] sm:$0xff]
        %v262 = vld [vmem:[%s242 + $0x34] sm:$0xf]
        %v263 = vld [vmem:[%s1] sm:$0xf]
        %v264 = vld [vmem:[%s1 + $0x4] sm:$0xf]
        %v265 = vld [vmem:[%s1 + $0x8] sm:$0xf]
        %v266 = vld [vmem:[%s1 + $0xc] sm:$0xf]
        %v267 = vld [vmem:[%s1 + $0x10] sm:$0xf]
        %v268 = vld [vmem:[%s1 + $0x14] sm:$0xf]
        %v269 = vld [vmem:[%s1 + $0x18] sm:$0xf]
        %v270 = vld [vmem:[%s1 + $0x1c] sm:$0xf]
        %v271 = vld [vmem:[%s1 + $0x20] sm:$0xf]
        %v272 = vld [vmem:[%s1 + $0x24] sm:$0xf]
        %v273 = vld [vmem:[%s1 + $0x28] sm:$0xf]
        %v274 = vld [vmem:[%s1 + $0x2c] sm:$0xf]
        %v275 = vld [vmem:[%s1 + $0x30] sm:$0xf]
        %v276 = vld [vmem:[%s1 + $0x34] sm:$0xf]
        %v277 = vld [vmem:[%s1 + $0x38] sm:$0xf]
        %v278 = vld [vmem:[%s1 + $0x3c] sm:$0xf]
        %v279 = vld [vmem:[%s1 + $0x40] sm:$0xf]
        %v280 = vld [vmem:[%s1 + $0x44] sm:$0xf]
        %v281 = vld [vmem:[%s1 + $0x48] sm:$0xf]
        %v282 = vld [vmem:[%s1 + $0x4c] sm:$0xf]
        %v283 = vld [vmem:[%s1 + $0x50] sm:$0xf]
        %v284 = vld [vmem:[%s1 + $0x54] sm:$0xf]
        %v285 = vld [vmem:[%s1 + $0x58] sm:$0xf]
        %v286 = vld [vmem:[%s1 + $0x5c] sm:$0xf]
        %v287 = vld [vmem:[%s1 + $0x60] sm:$0xf]
        %v288 = vld [vmem:[%s1 + $0x64] sm:$0xf]
        %v289 = vld [vmem:[%s1 + $0x68] sm:$0xf]
        %v290 = vld [vmem:[%s1 + $0x6c] sm:$0xf]
        %v291 = vld [vmem:[%s1 + $0x70] sm:$0xf]
        %v292 = vld [vmem:[%s1 + $0x74] sm:$0xf]
        %v293 = vld [vmem:[%s1 + $0x78] sm:$0xf]
        %v294 = vld [vmem:[%s1 + $0x7c] sm:$0xf]
        %v295 = vld [vmem:[%s1 + $0x80] sm:$0xf]
        %v296 = vld [vmem:[%s1 + $0x84] sm:$0xf]
        %v297 = vld [vmem:[%s1 + $0x88] sm:$0xf]
        %v298 = vld [vmem:[%s1 + $0x8c] sm:$0xf]
        %v299 = vld [vmem:[%s1 + $0x90] sm:$0xf]
        %v300 = vld [vmem:[%s1 + $0x94] sm:$0xf]
        %v301 = vld [vmem:[%s1 + $0x98] sm:$0xf]
        %v302 = vld [vmem:[%s1 + $0x9c] sm:$0xf]
        %v303 = vld [vmem:[%s1 + $0xa0] sm:$0xf]
        %v304 = vld [vmem:[%s1 + $0xa4] sm:$0xf]
        %v305 = vld [vmem:[%s1 + $0xa8] sm:$0xf]
        %v306 = vld [vmem:[%s1 + $0xac] sm:$0xf]
        %v307 = vld [vmem:[%s1 + $0xb0] sm:$0xf]
        %v308 = vld [vmem:[%s1 + $0xb4] sm:$0xf]
        %v309 = vld [vmem:[%s1 + $0xb8] sm:$0xf]
        %v310 = vld [vmem:[%s1 + $0xbc] sm:$0xf]
        %v311 = vld [vmem:[%s1 + $0xc0] sm:$0xf]
        %v312 = vld [vmem:[%s1 + $0xc4] sm:$0xf]
        %v313 = vld [vmem:[%s1 + $0xc8] sm:$0xf]
        %v314 = vld [vmem:[%s1 + $0xcc] sm:$0xf]
        %v315 = vld [vmem:[%s1 + $0xd0] sm:$0xf]
        %v316 = vld [vmem:[%s1 + $0xd4] sm:$0xf]
        %v317 = vld [vmem:[%s1 + $0xd8] sm:$0xf]
        %v318 = vld [vmem:[%s1 + $0xdc] sm:$0xf]
        %v319 = vld [vmem:[%s1 + $0xe0] sm:$0xf]
        %v320 = vld [vmem:[%s1 + $0xe4] sm:$0xf]
        %v321 = vld [vmem:[%s1 + $0xe8] sm:$0xf]
        %v322 = vld [vmem:[%s1 + $0xec] sm:$0xf]
        %v323 = vld [vmem:[%s1 + $0xf0] sm:$0xf]
        %v324 = vld [vmem:[%s1 + $0xf4] sm:$0xf]
        %v325 = vld [vmem:[%s1 + $0xf8] sm:$0xf]
        %v326 = vld [vmem:[%s1 + $0xfc] sm:$0xf]
        %v327 = vld [vmem:[%s1 + $0x100] sm:$0xf]
        %v328 = vld [vmem:[%s1 + $0x104] sm:$0xf]
        %v329 = vld [vmem:[%s1 + $0x108] sm:$0xf]
        %v330 = vld [vmem:[%s1 + $0x10c] sm:$0xf]
        %v331 = vld [vmem:[%s1 + $0x110] sm:$0xf]
        %v332 = vld [vmem:[%s1 + $0x114] sm:$0xf]
        %v333 = vld [vmem:[%s1 + $0x118] sm:$0xf]
        %v334 = vld [vmem:[%s1 + $0x11c] sm:$0xf]
        %v335 = vld [vmem:[%s1 + $0x120] sm:$0xf]
        %v336 = vld [vmem:[%s1 + $0x124] sm:$0xf]
        %v337 = vld [vmem:[%s1 + $0x128] sm:$0xf]
        %v338 = vld [vmem:[%s1 + $0x12c] sm:$0xf]
        %v339 = vld [vmem:[%s1 + $0x130] sm:$0xf]
        %v340 = vld [vmem:[%s1 + $0x134] sm:$0xf]
        %v341 = vld [vmem:[%s1 + $0x138] sm:$0xf]
        %v342 = vld [vmem:[%s1 + $0x13c] sm:$0xf]
        %v343 = vld [vmem:[%s1 + $0x140] sm:$0xf]
        %v344 = vld [vmem:[%s1 + $0x144] sm:$0xf]
        %v345 = vld [vmem:[%s1 + $0x148] sm:$0xf]
        %v346 = vld [vmem:[%s1 + $0x14c] sm:$0xf]
        %v347 = vld [vmem:[%s1 + $0x150] sm:$0xf]
        %v348 = vld [vmem:[%s1 + $0x154] sm:$0xf]
        %v349 = vld [vmem:[%s1 + $0x158] sm:$0xf]
        %v350 = vld [vmem:[%s1 + $0x15c] sm:$0xf]
        %v351 = vld [vmem:[%s1 + $0x160] sm:$0xf]
        %v352 = vld [vmem:[%s1 + $0x164] sm:$0xf]
        %v353 = vld [vmem:[%s1 + $0x168] sm:$0xf]
        %v354 = vld [vmem:[%s1 + $0x16c] sm:$0xf]
        %v355 = vld [vmem:[%s1 + $0x170] sm:$0xf]
        %v356 = vld [vmem:[%s1 + $0x174] sm:$0xf]
        %v357 = vld [vmem:[%s1 + $0x178] sm:$0xf]
        %v358 = vld [vmem:[%s1 + $0x17c] sm:$0xf]
        %v359 = vld [vmem:[%s1 + $0x180] sm:$0xf]
        %v360 = vld [vmem:[%s1 + $0x184] sm:$0xf]
        %v361 = vld [vmem:[%s2] sm:$0x1]
        %v363 = vlaneseq
        %v364 = vshrl.u32 %v363, 7
        %v365 = vsub.s32 0, %v364
        %v366 = vrot.slane %v361, %v365
        %v376 = vunpack.c.l.b16 %v255
        %v377 = vunpack.c.h.b16 %v255
        %v378 = vunpack.c.l.b16 %v256
        %v379 = vunpack.c.h.b16 %v256
        %v380 = vunpack.c.l.b16 %v257
        %v381 = vunpack.c.h.b16 %v257
        %v382 = vunpack.c.l.b16 %v258
        %v383 = vunpack.c.l.b16 %v259
        %v384 = vunpack.c.h.b16 %v259
        %v385 = vunpack.c.l.b16 %v260
        %v386 = vunpack.c.h.b16 %v260
        %v387 = vunpack.c.l.b16 %v261
        %v388 = vunpack.c.h.b16 %v261
        %v389 = vunpack.c.l.b16 %v262
        %v390 = vpack.c.b16 %v383, %v376
        %v391 = vpack.c.b16 %v384, %v377
        %v392 = vpack.c.b16 %v385, %v378
        %v393 = vpack.c.b16 %v386, %v379
        %v394 = vpack.c.b16 %v387, %v380
        %v395 = vpack.c.b16 %v388, %v381
        %v396 = vpack.c.b16 %v389, %v382
        %v501 = vunpack.c.l.b16 %v263
        %v502 = vunpack.c.l.b16 %v264
        %v503 = vunpack.c.l.b16 %v265
        %v504 = vunpack.c.l.b16 %v266
        %v505 = vunpack.c.l.b16 %v267
        %v506 = vunpack.c.l.b16 %v268
        %v507 = vunpack.c.l.b16 %v269
        %v508 = vunpack.c.l.b16 %v270
        %v509 = vunpack.c.l.b16 %v271
        %v510 = vunpack.c.l.b16 %v272
        %v511 = vunpack.c.l.b16 %v273
        %v512 = vunpack.c.l.b16 %v274
        %v513 = vunpack.c.l.b16 %v275
        %v514 = vunpack.c.l.b16 %v276
        %v515 = vunpack.c.l.b16 %v277
        %v516 = vunpack.c.l.b16 %v278
        %v517 = vunpack.c.l.b16 %v279
        %v518 = vunpack.c.l.b16 %v280
        %v519 = vunpack.c.l.b16 %v281
        %v520 = vunpack.c.l.b16 %v282
        %v521 = vunpack.c.l.b16 %v283
        %v522 = vunpack.c.l.b16 %v284
        %v523 = vunpack.c.l.b16 %v285
        %v524 = vunpack.c.l.b16 %v286
        %v525 = vunpack.c.l.b16 %v287
        %v526 = vunpack.c.l.b16 %v288
        %v527 = vunpack.c.l.b16 %v289
        %v528 = vunpack.c.l.b16 %v290
        %v529 = vunpack.c.l.b16 %v291
        %v530 = vunpack.c.l.b16 %v292
        %v531 = vunpack.c.l.b16 %v293
        %v532 = vunpack.c.l.b16 %v294
        %v533 = vunpack.c.l.b16 %v295
        %v534 = vunpack.c.l.b16 %v296
        %v535 = vunpack.c.l.b16 %v297
        %v536 = vunpack.c.l.b16 %v298
        %v537 = vunpack.c.l.b16 %v299
        %v538 = vunpack.c.l.b16 %v300
        %v539 = vunpack.c.l.b16 %v301
        %v540 = vunpack.c.l.b16 %v302
        %v541 = vunpack.c.l.b16 %v303
        %v542 = vunpack.c.l.b16 %v304
        %v543 = vunpack.c.l.b16 %v305
        %v544 = vunpack.c.l.b16 %v306
        %v545 = vunpack.c.l.b16 %v307
        %v546 = vunpack.c.l.b16 %v308
        %v547 = vunpack.c.l.b16 %v309
        %v548 = vunpack.c.l.b16 %v310
        %v549 = vunpack.c.l.b16 %v311
        %v550 = vunpack.c.l.b16 %v312
        %v551 = vunpack.c.l.b16 %v313
        %v552 = vunpack.c.l.b16 %v314
        %v553 = vunpack.c.l.b16 %v315
        %v554 = vunpack.c.l.b16 %v316
        %v555 = vunpack.c.l.b16 %v317
        %v556 = vunpack.c.l.b16 %v318
        %v557 = vunpack.c.l.b16 %v319
        %v558 = vunpack.c.l.b16 %v320
        %v559 = vunpack.c.l.b16 %v321
        %v560 = vunpack.c.l.b16 %v322
        %v561 = vunpack.c.l.b16 %v323
        %v562 = vunpack.c.l.b16 %v324
        %v563 = vunpack.c.l.b16 %v325
        %v564 = vunpack.c.l.b16 %v326
        %v565 = vunpack.c.l.b16 %v327
        %v566 = vunpack.c.l.b16 %v328
        %v567 = vunpack.c.l.b16 %v329
        %v568 = vunpack.c.l.b16 %v330
        %v569 = vunpack.c.l.b16 %v331
        %v570 = vunpack.c.l.b16 %v332
        %v571 = vunpack.c.l.b16 %v333
        %v572 = vunpack.c.l.b16 %v334
        %v573 = vunpack.c.l.b16 %v335
        %v574 = vunpack.c.l.b16 %v336
        %v575 = vunpack.c.l.b16 %v337
        %v576 = vunpack.c.l.b16 %v338
        %v577 = vunpack.c.l.b16 %v339
        %v578 = vunpack.c.l.b16 %v340
        %v579 = vunpack.c.l.b16 %v341
        %v580 = vunpack.c.l.b16 %v342
        %v581 = vunpack.c.l.b16 %v343
        %v582 = vunpack.c.l.b16 %v344
        %v583 = vunpack.c.l.b16 %v345
        %v584 = vunpack.c.l.b16 %v346
        %v585 = vunpack.c.l.b16 %v347
        %v586 = vunpack.c.l.b16 %v348
        %v587 = vunpack.c.l.b16 %v349
        %v588 = vunpack.c.l.b16 %v350
        %v589 = vunpack.c.l.b16 %v351
        %v590 = vunpack.c.l.b16 %v352
        %v591 = vunpack.c.l.b16 %v353
        %v592 = vunpack.c.l.b16 %v354
        %v593 = vunpack.c.l.b16 %v355
        %v594 = vunpack.c.l.b16 %v356
        %v595 = vunpack.c.l.b16 %v357
        %v596 = vunpack.c.l.b16 %v358
        %v597 = vunpack.c.l.b16 %v359
        %v598 = vunpack.c.l.b16 %v360
        %v599 = vpack.c.b16 %v502, %v501
        %v600 = vpack.c.b16 %v504, %v503
        %v601 = vpack.c.b16 %v506, %v505
        %v602 = vpack.c.b16 %v508, %v507
        %v603 = vpack.c.b16 %v510, %v509
        %v604 = vpack.c.b16 %v512, %v511
        %v605 = vpack.c.b16 %v514, %v513
        %v606 = vpack.c.b16 %v516, %v515
        %v607 = vpack.c.b16 %v518, %v517
        %v608 = vpack.c.b16 %v520, %v519
        %v609 = vpack.c.b16 %v522, %v521
        %v610 = vpack.c.b16 %v524, %v523
        %v611 = vpack.c.b16 %v526, %v525
        %v612 = vpack.c.b16 %v528, %v527
        %v613 = vpack.c.b16 %v530, %v529
        %v614 = vpack.c.b16 %v532, %v531
        %v615 = vpack.c.b16 %v534, %v533
        %v616 = vpack.c.b16 %v536, %v535
        %v617 = vpack.c.b16 %v538, %v537
        %v618 = vpack.c.b16 %v540, %v539
        %v619 = vpack.c.b16 %v542, %v541
        %v620 = vpack.c.b16 %v544, %v543
        %v621 = vpack.c.b16 %v546, %v545
        %v622 = vpack.c.b16 %v548, %v547
        %v623 = vpack.c.b16 %v550, %v549
        %v624 = vpack.c.b16 %v552, %v551
        %v625 = vpack.c.b16 %v554, %v553
        %v626 = vpack.c.b16 %v556, %v555
        %v627 = vpack.c.b16 %v558, %v557
        %v628 = vpack.c.b16 %v560, %v559
        %v629 = vpack.c.b16 %v562, %v561
        %v630 = vpack.c.b16 %v564, %v563
        %v631 = vpack.c.b16 %v566, %v565
        %v632 = vpack.c.b16 %v568, %v567
        %v633 = vpack.c.b16 %v570, %v569
        %v634 = vpack.c.b16 %v572, %v571
        %v635 = vpack.c.b16 %v574, %v573
        %v636 = vpack.c.b16 %v576, %v575
        %v637 = vpack.c.b16 %v578, %v577
        %v638 = vpack.c.b16 %v580, %v579
        %v639 = vpack.c.b16 %v582, %v581
        %v640 = vpack.c.b16 %v584, %v583
        %v641 = vpack.c.b16 %v586, %v585
        %v642 = vpack.c.b16 %v588, %v587
        %v643 = vpack.c.b16 %v590, %v589
        %v644 = vpack.c.b16 %v592, %v591
        %v645 = vpack.c.b16 %v594, %v593
        %v646 = vpack.c.b16 %v596, %v595
        %v647 = vpack.c.b16 %v598, %v597
        %vm697 = vcmask 130048
        %v699 = vsel %vm697, %v396, 0
        %701 = vmatprep.subr.bf16.mxu0 0
        %702 = vmatpush1.bf16.msra.mxu0 %v599
        %703 = vmatprep.subr.bf16.mxu0 0
        %704 = vmatpush1.bf16.msra.mxu0 %v600
        %705 = vmatprep.subr.bf16.mxu0 0
        %706 = vmatpush1.bf16.msra.mxu0 %v601
        %707 = vmatprep.subr.bf16.mxu0 0
        %708 = vmatpush1.bf16.msra.mxu0 %v602
        %709 = vmatprep.subr.bf16.mxu0 0
        %710 = vmatpush1.bf16.msra.mxu0 %v603
        %711 = vmatprep.subr.bf16.mxu0 0
        %712 = vmatpush1.bf16.msra.mxu0 %v604
        %713 = vmatprep.subr.bf16.mxu0 0
        %714 = vmatpush1.bf16.msra.mxu0 %v605
        %715 = vmatprep.subr.bf16.mxu0 0
        %716 = vmatpush1.bf16.msra.mxu0 %v606
        %717 = vmatprep.subr.bf16.mxu0 0
        %718 = vmatpush1.bf16.msra.mxu0 %v607
        %719 = vmatprep.subr.bf16.mxu0 0
        %720 = vmatpush1.bf16.msra.mxu0 %v608
        %721 = vmatprep.subr.bf16.mxu0 0
        %722 = vmatpush1.bf16.msra.mxu0 %v609
        %723 = vmatprep.subr.bf16.mxu0 0
        %724 = vmatpush1.bf16.msra.mxu0 %v610
        %725 = vmatprep.subr.bf16.mxu0 0
        %726 = vmatpush1.bf16.msra.mxu0 %v611
        %727 = vmatprep.subr.bf16.mxu0 0
        %728 = vmatpush1.bf16.msra.mxu0 %v612
        %729 = vmatprep.subr.bf16.mxu0 0
        %730 = vmatpush1.bf16.msra.mxu0 %v613
        %731 = vmatprep.subr.bf16.mxu0 0
        %732 = vmatpush1.bf16.msra.mxu0 %v614
        %733 = vmatprep.mubr.bf16.mxu0 %v391
        %734 = vmatmul.mubr.bf16.gmra.mrb[0].mxu0 %v390
        %v735 = vpop.f32.mrb[0].mxu0
        %v736 = vadd.f32 %v366, %v735
        %v737 = vpop.f32.mrb[0].mxu0
        %v738 = vpop.f32.mrb[0].mxu0
        %v739 = vadd.f32 %v366, %v738
        %v740 = vpop.f32.mrb[0].mxu0
        %741 = vdwg.mxu0
        %742 = vmatprep.subr.bf16.mxu0 0
        %743 = vmatpush1.bf16.msra.mxu0 %v615
        %744 = vmatprep.subr.bf16.mxu0 0
        %745 = vmatpush1.bf16.msra.mxu0 %v616
        %746 = vmatprep.subr.bf16.mxu0 0
        %747 = vmatpush1.bf16.msra.mxu0 %v617
        %748 = vmatprep.subr.bf16.mxu0 0
        %749 = vmatpush1.bf16.msra.mxu0 %v618
        %750 = vmatprep.subr.bf16.mxu0 0
        %751 = vmatpush1.bf16.msra.mxu0 %v619
        %752 = vmatprep.subr.bf16.mxu0 0
        %753 = vmatpush1.bf16.msra.mxu0 %v620
        %754 = vmatprep.subr.bf16.mxu0 0
        %755 = vmatpush1.bf16.msra.mxu0 %v621
        %756 = vmatprep.subr.bf16.mxu0 0
        %757 = vmatpush1.bf16.msra.mxu0 %v622
        %758 = vmatprep.subr.bf16.mxu0 0
        %759 = vmatpush1.bf16.msra.mxu0 %v623
        %760 = vmatprep.subr.bf16.mxu0 0
        %761 = vmatpush1.bf16.msra.mxu0 %v624
        %762 = vmatprep.subr.bf16.mxu0 0
        %763 = vmatpush1.bf16.msra.mxu0 %v625
        %764 = vmatprep.subr.bf16.mxu0 0
        %765 = vmatpush1.bf16.msra.mxu0 %v626
        %766 = vmatprep.subr.bf16.mxu0 0
        %767 = vmatpush1.bf16.msra.mxu0 %v627
        %768 = vmatprep.subr.bf16.mxu0 0
        %769 = vmatpush1.bf16.msra.mxu0 %v628
        %770 = vmatprep.subr.bf16.mxu0 0
        %771 = vmatpush1.bf16.msra.mxu0 %v629
        %772 = vmatprep.subr.bf16.mxu0 0
        %773 = vmatpush1.bf16.msra.mxu0 %v630
        %774 = vmatprep.mubr.bf16.mxu0 %v393
        %775 = vmatmul.mubr.bf16.gmra.mrb[0].mxu0 %v392
        %v776 = vpop.f32.mrb[0].mxu0
        %v777 = vadd.f32 %v736, %v776
        %v778 = vpop.f32.mrb[0].mxu0
        %v779 = vpop.f32.mrb[0].mxu0
        %v780 = vadd.f32 %v739, %v779
        %v781 = vpop.f32.mrb[0].mxu0
        %782 = vdwg.mxu0
        %783 = vmatprep.subr.bf16.mxu0 0
        %784 = vmatpush1.bf16.msra.mxu0 %v631
        %785 = vmatprep.subr.bf16.mxu0 0
        %786 = vmatpush1.bf16.msra.mxu0 %v632
        %787 = vmatprep.subr.bf16.mxu0 0
        %788 = vmatpush1.bf16.msra.mxu0 %v633
        %789 = vmatprep.subr.bf16.mxu0 0
        %790 = vmatpush1.bf16.msra.mxu0 %v634
        %791 = vmatprep.subr.bf16.mxu0 0
        %792 = vmatpush1.bf16.msra.mxu0 %v635
        %793 = vmatprep.subr.bf16.mxu0 0
        %794 = vmatpush1.bf16.msra.mxu0 %v636
        %795 = vmatprep.subr.bf16.mxu0 0
        %796 = vmatpush1.bf16.msra.mxu0 %v637
        %797 = vmatprep.subr.bf16.mxu0 0
        %798 = vmatpush1.bf16.msra.mxu0 %v638
        %799 = vmatprep.subr.bf16.mxu0 0
        %800 = vmatpush1.bf16.msra.mxu0 %v639
        %801 = vmatprep.subr.bf16.mxu0 0
        %802 = vmatpush1.bf16.msra.mxu0 %v640
        %803 = vmatprep.subr.bf16.mxu0 0
        %804 = vmatpush1.bf16.msra.mxu0 %v641
        %805 = vmatprep.subr.bf16.mxu0 0
        %806 = vmatpush1.bf16.msra.mxu0 %v642
        %807 = vmatprep.subr.bf16.mxu0 0
        %808 = vmatpush1.bf16.msra.mxu0 %v643
        %809 = vmatprep.subr.bf16.mxu0 0
        %810 = vmatpush1.bf16.msra.mxu0 %v644
        %811 = vmatprep.subr.bf16.mxu0 0
        %812 = vmatpush1.bf16.msra.mxu0 %v645
        %813 = vmatprep.subr.bf16.mxu0 0
        %814 = vmatpush1.bf16.msra.mxu0 %v646
        %815 = vmatprep.mubr.bf16.mxu0 %v395
        %816 = vmatmul.mubr.bf16.gmra.mrb[0].mxu0 %v394
        %v817 = vpop.f32.mrb[0].mxu0
        %v818 = vadd.f32 %v777, %v817
        %v819 = vpop.f32.mrb[0].mxu0
        %v820 = vpop.f32.mrb[0].mxu0
        %v821 = vadd.f32 %v780, %v820
        %v822 = vpop.f32.mrb[0].mxu0
        %823 = vdwg.mxu0
        %824 = vmatprep.subr.bf16.mxu0 0
        %825 = vmatpush1.bf16.msra.mxu0 %v647
        %826 = vmatprep.subr.bf16.mxu0 0
        %827 = vmatpush1.bf16.msra.mxu0 0
        %828 = vmatprep.subr.bf16.mxu0 0
        %829 = vmatpush1.bf16.msra.mxu0 0
        %830 = vmatprep.subr.bf16.mxu0 0
        %831 = vmatpush1.bf16.msra.mxu0 0
        %832 = vmatprep.subr.bf16.mxu0 0
        %833 = vmatpush1.bf16.msra.mxu0 0
        %834 = vmatprep.subr.bf16.mxu0 0
        %835 = vmatpush1.bf16.msra.mxu0 0
        %836 = vmatprep.subr.bf16.mxu0 0
        %837 = vmatpush1.bf16.msra.mxu0 0
        %838 = vmatprep.subr.bf16.mxu0 0
        %839 = vmatpush1.bf16.msra.mxu0 0
        %840 = vmatprep.subr.bf16.mxu0 0
        %841 = vmatpush1.bf16.msra.mxu0 0
        %842 = vmatprep.subr.bf16.mxu0 0
        %843 = vmatpush1.bf16.msra.mxu0 0
        %844 = vmatprep.subr.bf16.mxu0 0
        %845 = vmatpush1.bf16.msra.mxu0 0
        %846 = vmatprep.subr.bf16.mxu0 0
        %847 = vmatpush1.bf16.msra.mxu0 0
        %848 = vmatprep.subr.bf16.mxu0 0
        %849 = vmatpush1.bf16.msra.mxu0 0
        %850 = vmatprep.subr.bf16.mxu0 0
        %851 = vmatpush1.bf16.msra.mxu0 0
        %852 = vmatprep.subr.bf16.mxu0 0
        %853 = vmatpush1.bf16.msra.mxu0 0
        %854 = vmatprep.subr.bf16.mxu0 0
        %855 = vmatpush1.bf16.msra.mxu0 0
        %856 = vmatprep.mubr.bf16.mxu0 0
        %857 = vmatmul.mubr.bf16.gmra.mrb[0].mxu0 %v699
        %v858 = vpop.f32.mrb[0].mxu0
        %v859 = vadd.f32 %v818, %v858
        %v860 = vpop.f32.mrb[0].mxu0
        %v861 = vpop.f32.mrb[0].mxu0
        %v862 = vadd.f32 %v821, %v861
        %v863 = vpop.f32.mrb[0].mxu0
        %864 = vdwg.mxu0
        %v865 = vmax.f32 %v859, 0.0
        %v866 = vmax.f32 %v862, 0.0
        %v867 = vpack.c.bf16 %v866, %v865
        %v868 = vld [vmem:[%s3] sm:$0xf]
        %v869 = vld [vmem:[%s3 + $0x4] sm:$0xf]
        %v870 = vld [vmem:[%s3 + $0x8] sm:$0xf]
        %v871 = vld [vmem:[%s3 + $0xc] sm:$0xf]
        %v872 = vld [vmem:[%s3 + $0x10] sm:$0xf]
        %v873 = vld [vmem:[%s3 + $0x14] sm:$0xf]
        %v874 = vld [vmem:[%s3 + $0x18] sm:$0xf]
        %v875 = vld [vmem:[%s3 + $0x1c] sm:$0xf]
        %v876 = vld [vmem:[%s3 + $0x20] sm:$0xf]
        %v877 = vld [vmem:[%s3 + $0x24] sm:$0xf]
        %v878 = vld [vmem:[%s3 + $0x28] sm:$0xf]
        %v879 = vld [vmem:[%s3 + $0x2c] sm:$0xf]
        %v880 = vld [vmem:[%s3 + $0x30] sm:$0xf]
        %v881 = vld [vmem:[%s3 + $0x34] sm:$0xf]
        %v882 = vld [vmem:[%s3 + $0x38] sm:$0xf]
        %v883 = vld [vmem:[%s3 + $0x3c] sm:$0xf]
        %v884 = vld [vmem:[%s4] sm:$0x1]
        %v886 = vlaneseq
        %v887 = vshrl.u32 %v886, 7
        %v888 = vsub.s32 0, %v887
        %v889 = vrot.slane %v884, %v888
        %v907 = vunpack.c.l.b16 %v868
        %v908 = vunpack.c.l.b16 %v869
        %v909 = vunpack.c.l.b16 %v870
        %v910 = vunpack.c.l.b16 %v871
        %v911 = vunpack.c.l.b16 %v872
        %v912 = vunpack.c.l.b16 %v873
        %v913 = vunpack.c.l.b16 %v874
        %v914 = vunpack.c.l.b16 %v875
        %v915 = vunpack.c.l.b16 %v876
        %v916 = vunpack.c.l.b16 %v877
        %v917 = vunpack.c.l.b16 %v878
        %v918 = vunpack.c.l.b16 %v879
        %v919 = vunpack.c.l.b16 %v880
        %v920 = vunpack.c.l.b16 %v881
        %v921 = vunpack.c.l.b16 %v882
        %v922 = vunpack.c.l.b16 %v883
        %v923 = vpack.c.b16 %v908, %v907
        %v924 = vpack.c.b16 %v910, %v909
        %v925 = vpack.c.b16 %v912, %v911
        %v926 = vpack.c.b16 %v914, %v913
        %v927 = vpack.c.b16 %v916, %v915
        %v928 = vpack.c.b16 %v918, %v917
        %v929 = vpack.c.b16 %v920, %v919
        %v930 = vpack.c.b16 %v922, %v921
        %939 = vmatprep.subr.bf16.mxu0 0
        %940 = vmatpush1.bf16.msra.mxu0 %v923
        %941 = vmatprep.subr.bf16.mxu0 0
        %942 = vmatpush1.bf16.msra.mxu0 %v924
        %943 = vmatprep.subr.bf16.mxu0 0
        %944 = vmatpush1.bf16.msra.mxu0 %v925
        %945 = vmatprep.subr.bf16.mxu0 0
        %946 = vmatpush1.bf16.msra.mxu0 %v926
        %947 = vmatprep.subr.bf16.mxu0 0
        %948 = vmatpush1.bf16.msra.mxu0 %v927
        %949 = vmatprep.subr.bf16.mxu0 0
        %950 = vmatpush1.bf16.msra.mxu0 %v928
        %951 = vmatprep.subr.bf16.mxu0 0
        %952 = vmatpush1.bf16.msra.mxu0 %v929
        %953 = vmatprep.subr.bf16.mxu0 0
        %954 = vmatpush1.bf16.msra.mxu0 %v930
        %955 = vmatprep.subr.bf16.mxu0 0
        %956 = vmatpush1.bf16.msra.mxu0 0
        %957 = vmatprep.subr.bf16.mxu0 0
        %958 = vmatpush1.bf16.msra.mxu0 0
        %959 = vmatprep.subr.bf16.mxu0 0
        %960 = vmatpush1.bf16.msra.mxu0 0
        %961 = vmatprep.subr.bf16.mxu0 0
        %962 = vmatpush1.bf16.msra.mxu0 0
        %963 = vmatprep.subr.bf16.mxu0 0
        %964 = vmatpush1.bf16.msra.mxu0 0
        %965 = vmatprep.subr.bf16.mxu0 0
        %966 = vmatpush1.bf16.msra.mxu0 0
        %967 = vmatprep.subr.bf16.mxu0 0
        %968 = vmatpush1.bf16.msra.mxu0 0
        %969 = vmatprep.subr.bf16.mxu0 0
        %970 = vmatpush1.bf16.msra.mxu0 0
        %971 = vmatprep.mubr.bf16.mxu0 0
        %972 = vmatmul.mubr.bf16.gmra.mrb[0].mxu0 %v867
        %v973 = vpop.f32.mrb[0].mxu0
        %v974 = vadd.f32 %v889, %v973
        %v975 = vpop.f32.mrb[0].mxu0
        %v976 = vpop.f32.mrb[0].mxu0
        %v977 = vadd.f32 %v889, %v976
        %v978 = vpop.f32.mrb[0].mxu0
        %979 = vdwg.mxu0
        %v980 = vpack.c.bf16 %v977, %v974
        %v982 = vunpack.c.l.b16 %v980
        %v983 = vunpack.c.h.b16 %v980
        %v984 = vpack.c.b16 %v982, %v982
        %v985 = vpack.c.b16 %v983, %v983
        %988 = vst [vmem:[%s231] sm:$0xf] %v984
        %989 = vst [vmem:[%s231 + $0x4] sm:$0xf] %v985
        %s990 = sand.u32 %s134, 1
        %s991 = sand.u32 %s134, 1
        %s992 = smul.addr %s991, 8
        %s993 = scalar_lea.vmem [#allocation2], %s992
        // Predicated region
        $region41: #{simple_nn_forward.1} parent=39 // pred_check
          %p994 = pneg %p144
        $region42: #{simple_nn_forward.1} parent=39 // pred_check_branch
          %996 = sbr.rel (%p994) target = $region44
        $region43: #{simple_nn_forward.1} parent=39 // pred_region
          %s997 = smul.u32 2, %s16
          %s998 = ssub.s32 3, %s997
          %p999 = scmp.lt.s32.totalorder %s998, 2
          %s1000 = scalar_select %p999, %s998, 2
          %s1001 = smul.u32 64, %s1000
          %p1002 = scmp.ne.s32.totalorder 0, %s1001
          %s1003 = smul.addr %s997, 4
          %s1004 = scalar_lea.vmem %s5, %s1003
          // Predicated region
          $region45: #{simple_nn_forward.1} parent=43 // pred_check
            %p1005 = pneg %p1002
          $region46: #{simple_nn_forward.1} parent=43 // pred_check_branch
            %1007 = sbr.rel (%p1005) target = $region48
          $region47: #{simple_nn_forward.1} parent=43 // pred_region
            // Predicated region
            $region49: #{simple_nn_forward.1} parent=47 // pred_check
              _
            $region50: #{simple_nn_forward.1} parent=47 // pred_check_branch
              %1009 = sbr.rel target = $region52
            $region51: #{simple_nn_forward.1} parent=47 // pred_region
              // Predicated region
              $region71: #{simple_nn_forward.1} parent=51 // pred_check
                _
              $region72: #{simple_nn_forward.1} parent=51 // pred_check_branch
                %1060 = sbr.rel (0) target = $region74
              $region73: #{simple_nn_forward.1} parent=51 // pred_region
                %s1062 = sshrl.u32 %s1000, 1
                // While loop
                $region75: #{simple_nn_forward.1} parent=73 // loop_pre_header
                  _
                $region76: #{simple_nn_forward.1} parent=73 // loop_header
                  %s1064 = sphi 0, %s1066
                  %p1065 = scmp.ge.s32.totalorder %s1064, %s1062
                  %s1069 = sphi 0, %s1078
                  %s1070 = sphi %s993, %s1081
                  %s1071 = sphi %s1004, %s1082
                $region77: #{simple_nn_forward.1} parent=73 // loop_header_branch
                  %1068 = sbr.rel (%p1065) target = $region81
                $region78: #{simple_nn_forward.1} parent=73 // loop_body
                  %v1072 = vld [vmem:[%s1070] sm:$0xf]
                  %1073 = vst [vmem:[%s1071] sm:$0xf] %v1072
                  %v1074 = vld [vmem:[%s1070 + $0x4] sm:$0xf]
                  %1075 = vst [vmem:[%s1071 + $0x4] sm:$0xf] %v1074
                  %s1076 = sadd.s32 1, %s1069
                  %p1077 = scmp.ge.s32.totalorder %s1076, %s1062
                  %s1078 = scalar_select %p1077, 0, %s1076
                  %s1079 = smul.u32 %s1078, 8
                  %s1080 = smul.u32 %s1078, 8
                  %s1081 = scalar_lea.vmem %s993, %s1079 [#allocation2]
                  %s1082 = scalar_lea.vmem %s1004, %s1080
                $region79: #{simple_nn_forward.1} parent=73 // loop_footer
                  %s1066 = sadd.s32 %s1064, 1
                $region80: #{simple_nn_forward.1} parent=73 // loop_footer_branch
                  %1063 = sbr.rel target = $region76
                $region81: #{simple_nn_forward.1} parent=73 // loop_exit
                  _
                %s1083 = sshrl.u32 %s1000, 1
                %s1084 = sand.u32 %s1000, 1
                %s1085 = smul.u32 %s1083, 2
                %s1086 = smul.u32 4, %s1085
                %s1087 = scalar_lea.vmem %s993, %s1086 [#allocation2]
                %s1088 = smul.u32 4, %s1085
                %s1089 = scalar_lea.vmem %s1004, %s1088
                // While loop
                $region82: #{simple_nn_forward.1} parent=73 // loop_pre_header
                  _
                $region83: #{simple_nn_forward.1} parent=73 // loop_header
                  %s1091 = sphi 0, %s1093
                  %p1092 = scmp.ge.s32.totalorder %s1091, %s1084
                  %s1096 = sphi 0, %s1103
                  %s1097 = sphi %s1087, %s1106
                  %s1098 = sphi %s1089, %s1107
                $region84: #{simple_nn_forward.1} parent=73 // loop_header_branch
                  %1095 = sbr.rel (%p1092) target = $region88
                $region85: #{simple_nn_forward.1} parent=73 // loop_body
                  %v1099 = vld [vmem:[%s1097] sm:$0xf]
                  %1100 = vst [vmem:[%s1098] sm:$0xf] %v1099
                  %s1101 = sadd.s32 1, %s1096
                  %p1102 = scmp.ge.s32.totalorder %s1101, %s1084
                  %s1103 = scalar_select %p1102, 0, %s1101
                  %s1104 = smul.u32 %s1103, 4
                  %s1105 = smul.u32 %s1103, 4
                  %s1106 = scalar_lea.vmem %s1087, %s1104 [#allocation2]
                  %s1107 = scalar_lea.vmem %s1089, %s1105
                $region86: #{simple_nn_forward.1} parent=73 // loop_footer
                  %s1093 = sadd.s32 %s1091, 1
                $region87: #{simple_nn_forward.1} parent=73 // loop_footer_branch
                  %1090 = sbr.rel target = $region83
                $region88: #{simple_nn_forward.1} parent=73 // loop_exit
                  _
              $region74: #{simple_nn_forward.1} parent=51 // pred_fallthru
                _
            $region52: #{simple_nn_forward.1} parent=47 // pred_fallthru
              _
            // Predicated region
            $region53: #{simple_nn_forward.1} parent=47 // pred_check
              _
            $region54: #{simple_nn_forward.1} parent=47 // pred_check_branch
              %1011 = sbr.rel (0) target = $region56
            $region55: #{simple_nn_forward.1} parent=47 // pred_region
              %s1013 = sshrl.u32 %s1000, 1
              // While loop
              $region57: #{simple_nn_forward.1} parent=55 // loop_pre_header
                _
              $region58: #{simple_nn_forward.1} parent=55 // loop_header
                %s1015 = sphi 0, %s1017
                %p1016 = scmp.ge.s32.totalorder %s1015, %s1013
                %s1020 = sphi 0, %s1029
                %s1021 = sphi %s993, %s1032
                %s1022 = sphi %s1004, %s1033
              $region59: #{simple_nn_forward.1} parent=55 // loop_header_branch
                %1019 = sbr.rel (%p1016) target = $region63
              $region60: #{simple_nn_forward.1} parent=55 // loop_body
                %v1023 = vld [vmem:[%s1021] sm:$0xf]
                %1024 = vst [vmem:[%s1022] sm:$0xf] %v1023
                %v1025 = vld [vmem:[%s1021 + $0x4] sm:$0xf]
                %1026 = vst [vmem:[%s1022 + $0x4] sm:$0xf] %v1025
                %s1027 = sadd.s32 1, %s1020
                %p1028 = scmp.ge.s32.totalorder %s1027, %s1013
                %s1029 = scalar_select %p1028, 0, %s1027
                %s1030 = smul.u32 %s1029, 8
                %s1031 = smul.u32 %s1029, 8
                %s1032 = scalar_lea.vmem %s993, %s1030 [#allocation2]
                %s1033 = scalar_lea.vmem %s1004, %s1031
              $region61: #{simple_nn_forward.1} parent=55 // loop_footer
                %s1017 = sadd.s32 %s1015, 1
              $region62: #{simple_nn_forward.1} parent=55 // loop_footer_branch
                %1014 = sbr.rel target = $region58
              $region63: #{simple_nn_forward.1} parent=55 // loop_exit
                _
              %s1034 = sshrl.u32 %s1000, 1
              %s1035 = sand.u32 %s1000, 1
              %s1036 = smul.u32 %s1034, 2
              %s1037 = smul.u32 4, %s1036
              %s1038 = scalar_lea.vmem %s993, %s1037 [#allocation2]
              %s1039 = smul.u32 4, %s1036
              %s1040 = scalar_lea.vmem %s1004, %s1039
              // While loop
              $region64: #{simple_nn_forward.1} parent=55 // loop_pre_header
                _
              $region65: #{simple_nn_forward.1} parent=55 // loop_header
                %s1042 = sphi 0, %s1044
                %p1043 = scmp.ge.s32.totalorder %s1042, %s1035
                %s1047 = sphi 0, %s1054
                %s1048 = sphi %s1038, %s1057
                %s1049 = sphi %s1040, %s1058
              $region66: #{simple_nn_forward.1} parent=55 // loop_header_branch
                %1046 = sbr.rel (%p1043) target = $region70
              $region67: #{simple_nn_forward.1} parent=55 // loop_body
                %v1050 = vld [vmem:[%s1048] sm:$0xf]
                %1051 = vst [vmem:[%s1049] sm:$0xf] %v1050
                %s1052 = sadd.s32 1, %s1047
                %p1053 = scmp.ge.s32.totalorder %s1052, %s1035
                %s1054 = scalar_select %p1053, 0, %s1052
                %s1055 = smul.u32 %s1054, 4
                %s1056 = smul.u32 %s1054, 4
                %s1057 = scalar_lea.vmem %s1038, %s1055 [#allocation2]
                %s1058 = scalar_lea.vmem %s1040, %s1056
              $region68: #{simple_nn_forward.1} parent=55 // loop_footer
                %s1044 = sadd.s32 %s1042, 1
              $region69: #{simple_nn_forward.1} parent=55 // loop_footer_branch
                %1041 = sbr.rel target = $region65
              $region70: #{simple_nn_forward.1} parent=55 // loop_exit
                _
            $region56: #{simple_nn_forward.1} parent=47 // pred_fallthru
              _
          $region48: #{simple_nn_forward.1} parent=43 // pred_fallthru
            _
          %1108 = vnop
        $region44: #{simple_nn_forward.1} parent=39 // pred_fallthru
          _
      $region40: #{simple_nn_forward.1} parent=5 // pred_fallthru
        _
      %p1109 = scmp.le.s32.totalorder 2, %s11
      // Predicated region
      $region89: #{simple_nn_forward.1} parent=5 // pred_check
        %p1110 = pneg %p1109
      $region90: #{simple_nn_forward.1} parent=5 // pred_check_branch
        %1112 = sbr.rel (%p1110) target = $region92
      $region91: #{simple_nn_forward.1} parent=5 // pred_region
        %s1113 = ssub.s32 %s11, 2
        // Predicated region
        $region93: #{simple_nn_forward.1} parent=91 // pred_check
          %p1114 = pneg %p150
        $region94: #{simple_nn_forward.1} parent=91 // pred_check_branch
          %1116 = sbr.rel (%p1114) target = $region96
        $region95: #{simple_nn_forward.1} parent=91 // pred_region
          %s1117 = sand.u32 %s135, 1
          %s1118 = sand.u32 %s135, 1
          %s1119 = smul.addr %s1118, 8
          %s1120 = scalar_lea.vmem [#allocation2], %s1119
        $region96: #{simple_nn_forward.1} parent=91 // pred_fallthru
          _
      $region92: #{simple_nn_forward.1} parent=5 // pred_fallthru
        _
    $region6: #{simple_nn_forward.1} parent=1 // loop_footer
      %s15 = sadd.s32 1, %s11
    $region7: #{simple_nn_forward.1} parent=1 // loop_footer_branch
      %10 = sbr.rel target = $region3
    $region8: #{simple_nn_forward.1} parent=1 // loop_exit
      _

</llo_original>
